<compile_context>
chip_gen: v6e
topology: v6e:2x2x1
jax: 0.10.0
libtpu: 0.0.40
codegen_flags: <defaults>
</compile_context>

<pallas_src>
import jax
import jax.numpy as jnp
from jax.experimental import pallas as pl
from jax.experimental.pallas import tpu as pltpu


def _round_up(a, b):
    return ((a + b - 1) // b) * b


def _scale_skip_kernel(params_ref, x_ref, y_ref, o_ref):
    # params_ref lives in SMEM: [x_scale, y_scale, fused_bias]
    xs = params_ref[0]
    ys = params_ref[1]
    bias = params_ref[2]
    # Compute in f32 on the VPU, cast on store.
    xv = x_ref[...].astype(jnp.float32)
    yv = y_ref[...].astype(jnp.float32)
    o_ref[...] = (xv * xs + yv * ys + bias).astype(o_ref.dtype)


def _run_slab(params, x_slab, y_slab, tile_rows, itemsize):
    rows, w = x_slab.shape
    n_elems = rows * w
    grid = (pl.cdiv(rows, tile_rows),)
    cost = pl.CostEstimate(
        flops=4 * n_elems,
        transcendentals=0,
        bytes_accessed=3 * n_elems * itemsize,
    )
    return pl.pallas_call(
        _scale_skip_kernel,
        out_shape=jax.ShapeDtypeStruct((rows, w), x_slab.dtype),
        grid_spec=pltpu.PrefetchScalarGridSpec(
            num_scalar_prefetch=1,                 # params -> SMEM
            grid=grid,
            in_specs=[
                pl.BlockSpec((tile_rows, w), lambda i, p: (i, 0)),
                pl.BlockSpec((tile_rows, w), lambda i, p: (i, 0)),
            ],
            out_specs=pl.BlockSpec((tile_rows, w), lambda i, p: (i, 0)),
        ),
        compiler_params=pltpu.CompilerParams(
            dimension_semantics=("parallel",),
            # 3 streams x 2 buffers x <=4 MiB blocks = <=24 MiB live; the
            # 48 MiB scoped cap leaves headroom and fits v7x's 64 MiB VMEM.
            vmem_limit_bytes=48 * 1024 * 1024,
        ),
        cost_estimate=cost,
    )(params, x_slab, y_slab)


def scale_skip_1d(x, y, x_skipscale, x_skipbias, y_skipscale, y_skipbias,
                  *, lane_width=1024, target_block_bytes=4 * 1024 * 1024):
    """ScaleSkip1D forward (eval mode) as a Pallas TPU kernel.

    x, y: (B, F) activations of the same shape/dtype.
    The four parameters are scalars (any shape that reshapes to ()).
    """
    assert x.shape == y.shape and x.ndim == 2
    assert x.dtype == y.dtype
    B, F = x.shape
    n = B * F
    dtype = x.dtype
    itemsize = jnp.dtype(dtype).itemsize
    # Sublane packing minimum: f32 -> 8, bf16 -> 16, int8/fp8 -> 32.
    sublane_min = max(8, 32 // itemsize)

    # Fold the two biases into one; pack scalars for SMEM prefetch.
    xs = jnp.asarray(x_skipscale, jnp.float32).reshape(())
    ys = jnp.asarray(y_skipscale, jnp.float32).reshape(())
    bias = (jnp.asarray(x_skipbias, jnp.float32).reshape(())
            + jnp.asarray(y_skipbias, jnp.float32).reshape(()))
    params = jnp.stack([xs, ys, bias])

    # --- Lane-dense slab layout (copy-free whenever possible) --------------
    w = None
    for cand in (lane_width, 512, 256, 128):
        if cand % 128 == 0 and n % cand == 0:
            w = cand
            break
    if w is not None:
        # Fast path: contiguous reshape is free (no pad, no output slice).
        rows = n // w
        x_slab = x.reshape(rows, w)
        y_slab = y.reshape(rows, w)
        padded = False
    else:
        # Rare path: n is not a multiple of 128; pad only the flat tail
        # (< one 128-lane row of waste plus the unavoidable copies).
        w = min(lane_width, _round_up(n, 128))
        rows = pl.cdiv(n, w)
        n_pad = rows * w - n
        x_slab = jnp.pad(x.reshape(-1), (0, n_pad)).reshape(rows, w)
        y_slab = jnp.pad(y.reshape(-1), (0, n_pad)).reshape(rows, w)
        padded = True

    # --- Dtype-aware tile rows: ~target_block_bytes per stream -------------
    tr = max(sublane_min,
             ((target_block_bytes // itemsize) // w) // sublane_min * sublane_min)
    if tr >= rows:
        if rows >= 2 * sublane_min:
            # Whole slab would fit one block: still split into >=2 grid steps
            # so the "parallel" axis can use both TensorCores on v7x.
            tr = _round_up(pl.cdiv(rows, 2), sublane_min)
        else:
            # Single full-extent block (block dim == array dim is always legal).
            tr = rows
    # Note: grid = cdiv(rows, tr); a partial trailing block is handled by
    # Pallas (no round-up-to-tile padding of the slab itself).

    out_slab = _run_slab(params, x_slab, y_slab, tr, itemsize)

    if padded:
        return out_slab.reshape(-1)[:n].reshape(B, F)
    return out_slab.reshape(B, F)


def init_scale_skip_params(key, size=0.01):
    """Deterministic equivalent of nn.init.trunc_normal_ in ScaleSkip1D.__init__.

    trunc_normal_(t, mean, std) truncates at mean +/- 2*std in PyTorch.
    """
    k1, k2, k3, k4 = jax.random.split(key, 4)

    def tn(k, mean):
        z = jax.random.truncated_normal(k, -2.0, 2.0, shape=(1, 1),
                                        dtype=jnp.float32)
        return mean + size * z

    x_skipscale = tn(k1, 1.0)
    y_skipscale = tn(k2, 1.0)
    y_skipbias = tn(k3, 0.0)
    x_skipbias = tn(k4, 0.0)
    # The PyTorch while-loop re-samples if any param is exactly 0; with
    # continuous sampling this is measure-zero, so a single draw suffices.
    return x_skipscale, x_skipbias, y_skipscale, y_skipbias


if __name__ == "__main__":
    key = jax.random.PRNGKey(0)
    kx, ky, kp = jax.random.split(key, 3)

    x_scale, x_bias, y_scale, y_bias = init_scale_skip_params(kp, size=0.01)

    def ref_f32(a, b):
        af = a.astype(jnp.float32)
        bf = b.astype(jnp.float32)
        return (af * x_scale.reshape(()) + x_bias.reshape(())
                + bf * y_scale.reshape(()) + y_bias.reshape(()))

    # 1) Small aligned shape (fast, copy-free path; single block).
    B, F = 8, 128
    x = jax.random.normal(kx, (B, F), dtype=jnp.float32)
    y = jax.random.normal(ky, (B, F), dtype=jnp.float32)
    out = jax.block_until_ready(
        scale_skip_1d(x, y, x_scale, x_bias, y_scale, y_bias))
    assert out.shape == (B, F)
    assert jnp.allclose(out, ref_f32(x, y), atol=1e-5, rtol=1e-5), "mismatch (aligned)"

    # 2) Awkward shape (tail-padding path).
    B2, F2 = 13, 100
    x2 = jax.random.normal(kx, (B2, F2), dtype=jnp.float32)
    y2 = jax.random.normal(ky, (B2, F2), dtype=jnp.float32)
    out2 = jax.block_until_ready(
        scale_skip_1d(x2, y2, x_scale, x_bias, y_scale, y_bias))
    assert jnp.allclose(out2, ref_f32(x2, y2), atol=1e-5, rtol=1e-5), "mismatch (padded)"

    # 3) Medium aligned shape (copy-free reshape, multi-step parallel grid).
    B3, F3 = 256, 1024
    x3 = jax.random.normal(kx, (B3, F3), dtype=jnp.float32)
    y3 = jax.random.normal(ky, (B3, F3), dtype=jnp.float32)
    out3 = jax.block_until_ready(
        scale_skip_1d(x3, y3, x_scale, x_bias, y_scale, y_bias))
    assert jnp.allclose(out3, ref_f32(x3, y3), atol=1e-5, rtol=1e-5), "mismatch (medium)"

    # 4) bf16 (dtype-aware sublane tiling: tr multiple of 16).
    B4, F4 = 64, 512
    x4 = jax.random.normal(kx, (B4, F4), dtype=jnp.float32).astype(jnp.bfloat16)
    y4 = jax.random.normal(ky, (B4, F4), dtype=jnp.float32).astype(jnp.bfloat16)
    out4 = jax.block_until_ready(
        scale_skip_1d(x4, y4, x_scale, x_bias, y_scale, y_bias))
    assert jnp.allclose(out4.astype(jnp.float32), ref_f32(x4, y4),
                        atol=5e-2, rtol=2e-2), "mismatch (bf16)"

    print("KERNEL_OK")
</pallas_src>

<mosaic_0001>
module attributes {stable_mosaic.version = 11 : i64} {
  func.func @_scale_skip_kernel(%arg0: i32, %arg1: memref<3xf32, #tpu.memory_space<smem>>, %arg2: memref<1x1024xf32, #tpu.memory_space<vmem>>, %arg3: memref<1x1024xf32, #tpu.memory_space<vmem>>, %arg4: memref<1x1024xf32, #tpu.memory_space<vmem>>) attributes {dimension_semantics = [#tpu.dimension_semantics<parallel>], iteration_bounds = array<i64: 1>, scalar_prefetch = 1 : i64, scratch_operands = 0 : i64, tpu.core_type = #tpu.core_type<tc>, window_params = [{transform_indices = @transform_0, window_bounds = array<i64: 1, 1024>}, {transform_indices = @transform_1, window_bounds = array<i64: 1, 1024>}, {transform_indices = @transform_2, window_bounds = array<i64: 1, 1024>}]} {
    %c0 = arith.constant 0 : index
    %0 = memref.load %arg1[%c0] : memref<3xf32, #tpu.memory_space<smem>>
    %c1 = arith.constant 1 : index
    %1 = memref.load %arg1[%c1] : memref<3xf32, #tpu.memory_space<smem>>
    %c2 = arith.constant 2 : index
    %2 = memref.load %arg1[%c2] : memref<3xf32, #tpu.memory_space<smem>>
    %c0_0 = arith.constant 0 : index
    %c0_1 = arith.constant 0 : index
    %3 = vector.load %arg2[%c0_0, %c0_1] : memref<1x1024xf32, #tpu.memory_space<vmem>>, vector<1x1024xf32>
    %c0_2 = arith.constant 0 : index
    %c0_3 = arith.constant 0 : index
    %4 = vector.load %arg3[%c0_2, %c0_3] : memref<1x1024xf32, #tpu.memory_space<vmem>>, vector<1x1024xf32>
    %5 = vector.broadcast %0 : f32 to vector<1x1024xf32>
    %6 = arith.mulf %3, %5 : vector<1x1024xf32>
    %7 = vector.broadcast %1 : f32 to vector<1x1024xf32>
    %8 = arith.mulf %4, %7 : vector<1x1024xf32>
    %9 = arith.addf %6, %8 : vector<1x1024xf32>
    %10 = vector.broadcast %2 : f32 to vector<1x1024xf32>
    %11 = arith.addf %9, %10 : vector<1x1024xf32>
    %c0_4 = arith.constant 0 : index
    %c0_5 = arith.constant 0 : index
    %12 = vector.load %arg4[%c0_4, %c0_5] : memref<1x1024xf32, #tpu.memory_space<vmem>>, vector<1x1024xf32>
    tpu.vector_store %arg4[%c0_4, %c0_5], %11 {strides = array<i32>} : memref<1x1024xf32, #tpu.memory_space<vmem>>, vector<1x1024xf32>,
    return
  }
  func.func @transform_0(%arg0: i32, %arg1: memref<3xf32, #tpu.memory_space<smem>>) -> (i32, i32) {
    %c0_i32 = arith.constant 0 : i32
    %c0_i32_0 = arith.constant 0 : i32
    return %arg0, %c0_i32 : i32, i32
  }
  func.func @transform_1(%arg0: i32, %arg1: memref<3xf32, #tpu.memory_space<smem>>) -> (i32, i32) {
    %c0_i32 = arith.constant 0 : i32
    %c0_i32_0 = arith.constant 0 : i32
    return %arg0, %c0_i32 : i32, i32
  }
  func.func @transform_2(%arg0: i32, %arg1: memref<3xf32, #tpu.memory_space<smem>>) -> (i32, i32) {
    %c0_i32 = arith.constant 0 : i32
    %c0_i32_0 = arith.constant 0 : i32
    return %arg0, %c0_i32 : i32, i32
  }
}

</mosaic_0001>

<llo_original>
// kernel: tpu_custom_call.1
$region0: #{tpu_custom_call.1}
  #allocation0 [shape = 'u32[]', space=smem, size = 0x4, offset = 0x4, fixed_abs, tag = 'smem constant byte address 0x4 - core index']
  #allocation1 [shape = 'u32[144,128]{1,0:T(1,128)}', space=vmem, size = 0x12000, scoped, tag = 'internal scratch']
  #allocation2 [shape = 's32[1]{0}', space=sflag, size = 0x4, scoped, tag = 'scoped memory for tpu_custom_call.1']
  #allocation3 [shape = 'u8[512]{0}', space=smem, size = 0x200, scoped, tag = 'prefetched SMEM operand 0']
  %s0 = inlined_call_operand.hbm [shape: f32[3], index: 0, kind: input, shape index: {}]
  %s1 = inlined_call_operand.hbm [shape: f32[1,1024], index: 1, kind: input, shape index: {}]
  %s2 = inlined_call_operand.hbm [shape: f32[1,1024], index: 2, kind: input, shape index: {}]
  %s3 = inlined_call_operand.hbm [shape: f32[1,1024], index: 3, kind: output, shape index: {}]
  %s4 = sld [smem:[#allocation0]]
  $region26: #{tpu_custom_call.1} parent=0
    _
  %s6 = ssub.s32 1, %s4
  %s7 = scalar_select 0, %s6, %s4
  %9 = dma.hbm_to_smem %s0, 16, [#allocation3], [#allocation2]
  %10 = dma.done [#allocation2], 16
  %11 = sfence
  $region1: #{tpu_custom_call.1} parent=0
    #allocation4 [shape = 'u8[4096]{0}', space=vmem, size = 0x1000, scoped, tag = 'input window, operand 1, single buffered']
    #allocation5 [shape = 's32[1]{0}', space=sflag, size = 0x4, scoped, tag = 'scoped memory for tpu_custom_call.1']
    #allocation6 [shape = 's32[1]{0}', space=sflag, size = 0x4, scoped, tag = 'scoped memory for tpu_custom_call.1']
    #allocation7 [shape = 'u8[4096]{0}', space=vmem, size = 0x1000, scoped, tag = 'input window, operand 2, single buffered']
    #allocation8 [shape = 's32[1]{0}', space=sflag, size = 0x4, scoped, tag = 'scoped memory for tpu_custom_call.1']
    #allocation9 [shape = 'u8[4096]{0}', space=vmem, size = 0x1000, scoped, tag = 'output window, operand 0, single buffered']
    %12 = vsyncpa [#allocation5], 0
    %13 = vsyncpa [#allocation8], 0
    %14 = vsyncpa [#allocation6], 0
    // Predicated region
    $region2: #{tpu_custom_call.1} parent=1 // pred_check
      _
    $region3: #{tpu_custom_call.1} parent=1 // pred_check_branch
      %16 = sbr.rel (0) target = $region5
    $region4: #{tpu_custom_call.1} parent=1 // pred_region
      %s18 = ssub.s32 128, 128
      %19 = vsyncadd [#allocation5], %s18
      %s21 = sshll.u32 [#allocation4], 4
      %s22 = int_to_ptr.vmem [resolvable:$true] %s21
      %24 = dma.hbm_to_vmem [thread:$0]  %s1, 128, %s22, [#allocation5]
    $region5: #{tpu_custom_call.1} parent=1 // pred_fallthru
      _
    // Predicated region
    $region6: #{tpu_custom_call.1} parent=1 // pred_check
      _
    $region7: #{tpu_custom_call.1} parent=1 // pred_check_branch
      %26 = sbr.rel (0) target = $region9
    $region8: #{tpu_custom_call.1} parent=1 // pred_region
      %s28 = ssub.s32 128, 128
      %29 = vsyncadd [#allocation8], %s28
      %s31 = sshll.u32 [#allocation7], 4
      %s32 = int_to_ptr.vmem [resolvable:$true] %s31
      %34 = dma.hbm_to_vmem [thread:$0]  %s2, 128, %s32, [#allocation8]
    $region9: #{tpu_custom_call.1} parent=1 // pred_fallthru
      _
    // Predicated region
    $region10: #{tpu_custom_call.1} parent=1 // pred_check
      _
    $region11: #{tpu_custom_call.1} parent=1 // pred_check_branch
      %36 = sbr.rel (0) target = $region13
    $region12: #{tpu_custom_call.1} parent=1 // pred_region
      %37 = dma.done [#allocation5], 128
    $region13: #{tpu_custom_call.1} parent=1 // pred_fallthru
      _
    // Predicated region
    $region14: #{tpu_custom_call.1} parent=1 // pred_check
      _
    $region15: #{tpu_custom_call.1} parent=1 // pred_check_branch
      %39 = sbr.rel (0) target = $region17
    $region16: #{tpu_custom_call.1} parent=1 // pred_region
      %40 = dma.done [#allocation8], 128
    $region17: #{tpu_custom_call.1} parent=1 // pred_fallthru
      _
    %s41 = sld [smem:[#allocation3]]
    %s42 = sld [smem:[#allocation3 + $0x1]]
    %s43 = sld [smem:[#allocation3 + $0x2]]
    %v44 = vld [vmem:[#allocation4] sm:$0xff]
    %v45 = vld [vmem:[#allocation7] sm:$0xff]
    %v46 = vstv %s41
    %v47 = vmul.f32 %v44, %v46
    %v48 = vstv %s42
    %v49 = vmul.f32 %v45, %v48
    %v50 = vadd.f32 %v47, %v49
    %v51 = vstv %s43
    %v52 = vadd.f32 %v50, %v51
    %53 = vst [vmem:[#allocation9] sm:$0xff] %v52
    // Predicated region
    $region18: #{tpu_custom_call.1} parent=1 // pred_check
      _
    $region19: #{tpu_custom_call.1} parent=1 // pred_check_branch
      %55 = sbr.rel (0) target = $region21
    $region20: #{tpu_custom_call.1} parent=1 // pred_region
      %s57 = ssub.s32 128, 128
      %58 = vsyncadd [#allocation6], %s57
      %s60 = sshll.u32 [#allocation9], 4
      %s61 = int_to_ptr.vmem [resolvable:$true] %s60
      %63 = dma.vmem_to_hbm [thread:$0]  %s61, 128, %s3, [#allocation6]
    $region21: #{tpu_custom_call.1} parent=1 // pred_fallthru
      _
    // Predicated region
    $region22: #{tpu_custom_call.1} parent=1 // pred_check
      _
    $region23: #{tpu_custom_call.1} parent=1 // pred_check_branch
      %65 = sbr.rel (0) target = $region25
    $region24: #{tpu_custom_call.1} parent=1 // pred_region
      %66 = dma.done [#allocation6], 128
    $region25: #{tpu_custom_call.1} parent=1 // pred_fallthru
      _
    %67 = vsyncpa [#allocation5], 1
    %68 = vsyncpa [#allocation8], 1
    %69 = vsyncpa [#allocation6], 1

</llo_original>
